<compile_context>
chip_gen: v7x
topology: tpu7x:2x2x1
jax: 0.10.0
libtpu: 0.0.40
codegen_flags: <defaults>
</compile_context>

<pallas_src>
import functools

import jax
import jax.numpy as jnp
from jax import lax
from jax.experimental import pallas as pl
from jax.experimental.pallas import tpu as pltpu


def _conv_bn_prelu_kernel(x_ref, w_ref, p_ref, o_ref):
    """One grid step = B_blk images, one MXU matmul + fused BN/PReLU epilogue.

    x_ref: (1, K, B_blk*M)    full-im2col input, K = Cin*KH*KW, M = H_out*W_out
    w_ref: (Cout, K)          conv weights with eval-BN scale folded in
    p_ref: (Cout, 2)          [:, 0] = folded BN bias, [:, 1] = PReLU alpha
    o_ref: (1, Cout, B_blk*M) channel-major, lane-dense output
    """
    acc = jnp.dot(w_ref[...], x_ref[0], preferred_element_type=jnp.float32)

    # Folded BN bias + per-channel PReLU on the f32 accumulator.
    bias = p_ref[:, 0:1]                     # (Cout, 1)
    alpha = p_ref[:, 1:2]                    # (Cout, 1)
    y = acc + bias
    y = jnp.where(y > 0.0, y, alpha * y)

    o_ref[0] = y.astype(o_ref.dtype)


def _pick_batch_block(n, m, target_lanes=1024, max_lanes=4096):
    """Images per grid step.

    Amortize the ~0.35us per-grid-step overhead (lane extent b*m near
    `target_lanes`) while keeping >=2 grid steps whenever N allows it so both
    v7x TensorCores get pipelined work.
    """
    divisors = [b for b in range(1, n + 1) if n % b == 0 and b * m <= max_lanes]
    if not divisors:
        return 1
    multi = [b for b in divisors if n // b >= 2] or divisors
    under = [b for b in multi if b * m <= target_lanes]
    return max(under) if under else min(multi)


@functools.partial(jax.jit,
                   static_argnames=("stride", "padding", "eps",
                                    "compute_dtype", "out_dtype", "b_blk"))
def conv_block_forward(x_nchw, w_oihw, gamma, beta, running_mean, running_var,
                       alpha, stride=(1, 1), padding=(0, 0), eps=1e-5,
                       compute_dtype=jnp.bfloat16, out_dtype=None, b_blk=None):
    """Pallas implementation of Conv_block.forward (eval-mode BN).

    x_nchw:  (N, Cin, H, W)      float32
    w_oihw:  (Cout, Cin, KH, KW) float32 (Conv2d weight, bias=False)
    returns: (N, Cout, H_out, W_out) in `out_dtype` (defaults to compute_dtype)
    """
    assert stride == (1, 1), "only stride=(1,1) supported"
    n, cin, h, w = x_nchw.shape
    cout, cin_w, kh, kw = w_oihw.shape
    assert cin == cin_w, "groups=1 only"
    ph, pw = padding
    h_out = h + 2 * ph - kh + 1
    w_out = w + 2 * pw - kw + 1
    m = h_out * w_out
    k_dim = cin * kh * kw
    if out_dtype is None:
        out_dtype = compute_dtype
    if b_blk is None:
        b_blk = _pick_batch_block(n, m)
    assert n % b_blk == 0, (n, b_blk)
    g = n // b_blk

    # ---- Wrapper prep: one fused XLA pass -> full im2col (KH *and* KW folded
    #      into the contraction) with B_blk images concatenated on the lane
    #      axis.  No misaligned / masked slices remain inside the kernel. ----
    x_pad = jnp.pad(x_nchw, ((0, 0), (0, 0), (ph, ph), (pw, pw)))
    taps = [x_pad[:, :, dh:dh + h_out, dw:dw + w_out]
            for dh in range(kh) for dw in range(kw)]
    x_col = jnp.stack(taps, axis=2)                  # (N, Cin, KH*KW, Hout, Wout)
    x_col = x_col.reshape(n, k_dim, m)               # K index = c*KH*KW + kh*KW + kw
    x_grp = (x_col.reshape(g, b_blk, k_dim, m)
             .transpose(0, 2, 1, 3)
             .reshape(g, k_dim, b_blk * m)
             .astype(compute_dtype))                 # (G, K, B_blk*M), lane-dense

    # Eval-mode BatchNorm folded: scale into the weights, bias kept separate.
    scale = gamma / jnp.sqrt(running_var + eps)      # (Cout,)
    bias = beta - running_mean * scale               # (Cout,)
    w_k = (w_oihw.astype(jnp.float32) * scale[:, None, None, None])
    w_k = w_k.reshape(cout, k_dim).astype(compute_dtype)   # matches x_col K order

    params = jnp.stack([bias, alpha], axis=1).astype(jnp.float32)   # (Cout, 2)

    # VMEM budget from actual block sizes (double-buffered in/out + weights);
    # raise the scoped limit when blocks outgrow the 16/32 MiB defaults.
    in_bytes = k_dim * b_blk * m * jnp.dtype(compute_dtype).itemsize
    out_bytes = cout * b_blk * m * jnp.dtype(out_dtype).itemsize
    w_bytes = cout * k_dim * jnp.dtype(compute_dtype).itemsize
    vmem_limit = int(min(64 << 20,
                         max(32 << 20, 4 * (in_bytes + out_bytes) + 2 * w_bytes)))

    out_flat = pl.pallas_call(
        _conv_bn_prelu_kernel,
        out_shape=jax.ShapeDtypeStruct((g, cout, b_blk * m), out_dtype),
        grid_spec=pltpu.PrefetchScalarGridSpec(
            num_scalar_prefetch=0,
            grid=(g,),
            in_specs=[
                pl.BlockSpec((1, k_dim, b_blk * m), lambda i: (i, 0, 0)),
                pl.BlockSpec((cout, k_dim), lambda i: (0, 0)),
                pl.BlockSpec((cout, 2), lambda i: (0, 0)),
            ],
            out_specs=pl.BlockSpec((1, cout, b_blk * m), lambda i: (i, 0, 0)),
        ),
        compiler_params=pltpu.CompilerParams(
            dimension_semantics=("parallel",),
            vmem_limit_bytes=vmem_limit),
    )(x_grp, w_k, params)

    # Un-group the per-step image batch; everything stays channel-major (NCHW).
    out = out_flat.reshape(g, cout, b_blk, h_out, w_out)
    out = out.transpose(0, 2, 1, 3, 4).reshape(n, cout, h_out, w_out)
    return out


def _reference_forward(x_nchw, w_oihw, gamma, beta, running_mean, running_var,
                       alpha, stride, padding, eps=1e-5):
    """Plain-JAX reference (mirrors PyTorch Conv2d + eval BatchNorm2d + PReLU)."""
    y = lax.conv_general_dilated(
        x_nchw, w_oihw, window_strides=stride,
        padding=[(padding[0], padding[0]), (padding[1], padding[1])],
        dimension_numbers=("NCHW", "OIHW", "NCHW"))
    inv = gamma / jnp.sqrt(running_var + eps)
    y = y * inv[None, :, None, None] + (beta - running_mean * inv)[None, :, None, None]
    a = alpha[None, :, None, None]
    return jnp.where(y > 0, y, a * y)


if __name__ == "__main__":
    # Conv_block(in_c=4, out_c=8, kernel=(3, 3), stride=(1, 1), padding=(1, 1))
    CIN, H, W = 4, 16, 16
    COUT, KH, KW = 8, 3, 3
    STRIDE, PADDING = (1, 1), (1, 1)

    key = jax.random.PRNGKey(0)
    kx, kw_, kg, kb, km, kv, ka = jax.random.split(key, 7)

    conv_w = jax.random.normal(kw_, (COUT, CIN, KH, KW), jnp.float32) * 0.1
    bn_gamma = 1.0 + 0.1 * jax.random.normal(kg, (COUT,), jnp.float32)
    bn_beta = 0.1 * jax.random.normal(kb, (COUT,), jnp.float32)
    bn_mean = 0.1 * jax.random.normal(km, (COUT,), jnp.float32)
    bn_var = jnp.abs(jax.random.normal(kv, (COUT,), jnp.float32)) + 0.5
    prelu_alpha = (jnp.full((COUT,), 0.25, jnp.float32)
                   + 0.01 * jax.random.normal(ka, (COUT,), jnp.float32))

    # 1) N=2, f32 compute/output: algorithm-exact (b_blk=1 -> 2 grid steps).
    x2 = jax.random.normal(kx, (2, CIN, H, W), jnp.float32)
    ref2 = _reference_forward(x2, conv_w, bn_gamma, bn_beta, bn_mean, bn_var,
                              prelu_alpha, STRIDE, PADDING)
    out2 = conv_block_forward(x2, conv_w, bn_gamma, bn_beta, bn_mean, bn_var,
                              prelu_alpha, stride=STRIDE, padding=PADDING,
                              compute_dtype=jnp.float32, out_dtype=jnp.float32)
    out2 = jax.block_until_ready(out2)
    assert out2.shape == (2, COUT, H, W), out2.shape
    assert jnp.allclose(out2, ref2, atol=1e-4, rtol=1e-4), \
        float(jnp.max(jnp.abs(out2 - ref2)))

    # 2) N=4, f32: exercises the batched lane axis (b_blk=2, 2 grid steps).
    x4 = jax.random.normal(jax.random.fold_in(kx, 4), (4, CIN, H, W), jnp.float32)
    ref4 = _reference_forward(x4, conv_w, bn_gamma, bn_beta, bn_mean, bn_var,
                              prelu_alpha, STRIDE, PADDING)
    out4 = conv_block_forward(x4, conv_w, bn_gamma, bn_beta, bn_mean, bn_var,
                              prelu_alpha, stride=STRIDE, padding=PADDING,
                              compute_dtype=jnp.float32, out_dtype=jnp.float32)
    out4 = jax.block_until_ready(out4)
    assert out4.shape == (4, COUT, H, W), out4.shape
    assert jnp.allclose(out4, ref4, atol=1e-4, rtol=1e-4), \
        float(jnp.max(jnp.abs(out4 - ref4)))

    # 3) N=4, default bf16 compute + bf16 writeback (memory-optimized path):
    #    loose tolerance for bf16 rounding (accumulation stays f32 in-kernel).
    out4_bf16 = conv_block_forward(x4, conv_w, bn_gamma, bn_beta, bn_mean,
                                   bn_var, prelu_alpha,
                                   stride=STRIDE, padding=PADDING)
    out4_bf16 = jax.block_until_ready(out4_bf16)
    assert out4_bf16.shape == (4, COUT, H, W), out4_bf16.shape
    assert out4_bf16.dtype == jnp.bfloat16, out4_bf16.dtype
    err = jnp.max(jnp.abs(out4_bf16.astype(jnp.float32) - ref4))
    assert jnp.allclose(out4_bf16.astype(jnp.float32), ref4,
                        atol=7e-2, rtol=7e-2), float(err)

    print("KERNEL_OK")
</pallas_src>

<mosaic_0001>
module attributes {stable_mosaic.version = 11 : i64} {
  func.func @_conv_bn_prelu_kernel(%arg0: i32, %arg1: memref<1x36x256xf32, #tpu.memory_space<vmem>>, %arg2: memref<8x36xf32, #tpu.memory_space<vmem>>, %arg3: memref<8x2xf32, #tpu.memory_space<vmem>>, %arg4: memref<1x8x256xf32, #tpu.memory_space<vmem>>) attributes {dimension_semantics = [#tpu.dimension_semantics<parallel>], iteration_bounds = array<i64: 2>, scalar_prefetch = 0 : i64, scratch_operands = 0 : i64, tpu.core_type = #tpu.core_type<tc>, window_params = [{transform_indices = @transform_0, window_bounds = array<i64: 1, 36, 256>}, {pipeline_mode = #tpu.pipeline_mode<synchronous>, transform_indices = @transform_1, window_bounds = array<i64: 8, 36>}, {pipeline_mode = #tpu.pipeline_mode<synchronous>, transform_indices = @transform_2, window_bounds = array<i64: 8, 2>}, {transform_indices = @transform_3, window_bounds = array<i64: 1, 8, 256>}]} {
    %c0 = arith.constant 0 : index
    %c0_0 = arith.constant 0 : index
    %0 = vector.load %arg2[%c0, %c0_0] : memref<8x36xf32, #tpu.memory_space<vmem>>, vector<8x36xf32>
    %c0_1 = arith.constant 0 : index
    %c0_2 = arith.constant 0 : index
    %c0_3 = arith.constant 0 : index
    %1 = vector.load %arg1[%c0_1, %c0_2, %c0_3] : memref<1x36x256xf32, #tpu.memory_space<vmem>>, vector<1x36x256xf32>
    %2 = vector.shape_cast %1 : vector<1x36x256xf32> to vector<36x256xf32>
    %cst = arith.constant dense<0.000000e+00> : vector<8x256xf32>
    %3 = tpu.matmul %0, %2, %cst {dimension_numbers = #tpu.dot_dimension_numbers<[1], [0], [0], [1], [0, 0, 1, 1], [], []>} : vector<8x36xf32>, vector<36x256xf32>, vector<8x256xf32> -> vector<8x256xf32>
    %c0_4 = arith.constant 0 : index
    %c0_5 = arith.constant 0 : index
    %4 = vector.load %arg3[%c0_4, %c0_5] : memref<8x2xf32, #tpu.memory_space<vmem>>, vector<8x1xf32>
    %c0_6 = arith.constant 0 : index
    %c1 = arith.constant 1 : index
    %5 = vector.load %arg3[%c0_6, %c1] : memref<8x2xf32, #tpu.memory_space<vmem>>, vector<8x1xf32>
    %6 = vector.broadcast %4 : vector<8x1xf32> to vector<8x256xf32>
    %7 = arith.addf %3, %6 : vector<8x256xf32>
    %cst_7 = arith.constant 0.000000e+00 : f32
    %8 = vector.broadcast %cst_7 : f32 to vector<8x256xf32>
    %9 = arith.cmpf ogt, %7, %8 : vector<8x256xf32>
    %10 = vector.broadcast %5 : vector<8x1xf32> to vector<8x256xf32>
    %11 = arith.mulf %10, %7 : vector<8x256xf32>
    %12 = arith.select %9, %7, %11 : vector<8x256xi1>, vector<8x256xf32>
    %c0_8 = arith.constant 0 : index
    %c0_9 = arith.constant 0 : index
    %c0_10 = arith.constant 0 : index
    %13 = vector.load %arg4[%c0_8, %c0_9, %c0_10] : memref<1x8x256xf32, #tpu.memory_space<vmem>>, vector<1x8x256xf32>
    %14 = vector.shape_cast %13 : vector<1x8x256xf32> to vector<8x256xf32>
    %15 = vector.shape_cast %12 : vector<8x256xf32> to vector<1x8x256xf32>
    tpu.vector_store %arg4[%c0_8, %c0_9, %c0_10], %15 {strides = array<i32>} : memref<1x8x256xf32, #tpu.memory_space<vmem>>, vector<1x8x256xf32>,
    return
  }
  func.func @transform_0(%arg0: i32) -> (i32, i32, i32) {
    %c0_i32 = arith.constant 0 : i32
    %c0_i32_0 = arith.constant 0 : i32
    %c0_i32_1 = arith.constant 0 : i32
    return %arg0, %c0_i32, %c0_i32_0 : i32, i32, i32
  }
  func.func @transform_1(%arg0: i32) -> (i32, i32) {
    %c0_i32 = arith.constant 0 : i32
    %c0_i32_0 = arith.constant 0 : i32
    %c0_i32_1 = arith.constant 0 : i32
    return %c0_i32, %c0_i32_0 : i32, i32
  }
  func.func @transform_2(%arg0: i32) -> (i32, i32) {
    %c0_i32 = arith.constant 0 : i32
    %c0_i32_0 = arith.constant 0 : i32
    %c0_i32_1 = arith.constant 0 : i32
    return %c0_i32, %c0_i32_0 : i32, i32
  }
  func.func @transform_3(%arg0: i32) -> (i32, i32, i32) {
    %c0_i32 = arith.constant 0 : i32
    %c0_i32_0 = arith.constant 0 : i32
    %c0_i32_1 = arith.constant 0 : i32
    return %arg0, %c0_i32, %c0_i32_0 : i32, i32, i32
  }
}

</mosaic_0001>

<llo_original>
// kernel: conv_block_forward.1
$region0: #{conv_block_forward.1}
  #allocation0 [shape = 'u32[]', space=smem, size = 0x4, offset = 0x4, fixed_abs, tag = 'smem constant byte address 0x4 - core index']
  #allocation1 [shape = 'u32[144,128]{1,0:T(1,128)}', space=vmem, size = 0x12000, scoped, tag = 'internal scratch']
  %s0 = inlined_call_operand.vmem [shape: f32[2,36,256], index: 0, kind: input, shape index: {}]
  %s1 = inlined_call_operand.vmem [shape: f32[8,36], index: 1, kind: input, shape index: {}]
  %s2 = inlined_call_operand.vmem [shape: f32[8,2], index: 2, kind: input, shape index: {}]
  %s3 = inlined_call_operand.vmem [shape: f32[2,8,256], index: 3, kind: output, shape index: {}]
  %s4 = sld [smem:[#allocation0]]
  $region45: #{conv_block_forward.1} parent=0
    _
  %s6 = ssub.s32 1, %s4
  %s7 = scalar_select 0, %s6, %s4
  loop: start=0, step=1, limit=4
  $region2: #{conv_block_forward.1} parent=0 // loop_pre_header
    _
  $region3: #{conv_block_forward.1} parent=0 // loop_header
    %s9 = sphi 0, %s13
    %p10 = scmp.ge.s32.totalorder %s9, 4
    %s19 = sphi 0, %s21
    %s22 = sphi 0, %s19
    %s23 = sphi 0, %s22
    %s39 = sphi 0, %s23
    %s43 = sphi 0, %s43
    %s45 = sphi 0, %s43
    %s46 = sphi 0, %s45
    %s60 = sphi 0, %s46
    %s64 = sphi 0, %s64
    %s66 = sphi 0, %s64
    %s67 = sphi 0, %s66
    %s81 = sphi 0, %s67
    %s87 = sphi 0, %s89
    %s90 = sphi 0, %s87
    %s91 = sphi 0, %s90
    %s107 = sphi 0, %s91
  $region4: #{conv_block_forward.1} parent=0 // loop_header_branch
    %12 = sbr.rel (%p10) target = $region8
  $region5: #{conv_block_forward.1} parent=0 // loop_body
    %s14 = ssub.s32 %s9, 1
    %s15 = ssub.s32 %s9, 2
    %s16 = sadd.s32 %s9, 1
    %s17 = ssub.s32 %s9, %s16
    %p18 = scmp.eq.s32.totalorder %s17, 0
    %s20 = sadd.s32 %s19, 1
    %s21 = scalar_select %p18, %s19, %s20
    %p24 = pneg %p18
    %p25 = scmp.eq.s32.totalorder %s9, 1
    %p26 = por %p24, %p25
    %p27 = scmp.ne.s32.totalorder %s19, %s22
    %p28 = scmp.eq.s32.totalorder %s9, 0
    %p29 = por %p27, %p28
    %p30 = scmp.ne.s32.totalorder %s19, %s22
    %p31 = scmp.eq.s32.totalorder %s14, 1
    %p32 = por %p30, %p31
    %p33 = scmp.ne.s32.totalorder %s22, %s23
    %p34 = scmp.eq.s32.totalorder %s14, 0
    %p35 = por %p33, %p34
    %p36 = scmp.ne.s32.totalorder %s22, %s23
    %p37 = scmp.eq.s32.totalorder %s15, 1
    %p38 = por %p36, %p37
    %p40 = scmp.ne.s32.totalorder %s23, %s39
    %p41 = scmp.eq.s32.totalorder %s15, 0
    %p42 = por %p40, %p41
    %s44 = sadd.s32 %s43, 1
    %p47 = scmp.eq.s32.totalorder %s9, 1
    %p48 = scmp.ne.s32.totalorder %s43, %s45
    %p49 = scmp.eq.s32.totalorder %s9, 0
    %p50 = por %p48, %p49
    %p51 = scmp.ne.s32.totalorder %s43, %s45
    %p52 = scmp.eq.s32.totalorder %s14, 1
    %p53 = por %p51, %p52
    %p54 = scmp.ne.s32.totalorder %s45, %s46
    %p55 = scmp.eq.s32.totalorder %s14, 0
    %p56 = por %p54, %p55
    %p57 = scmp.ne.s32.totalorder %s45, %s46
    %p58 = scmp.eq.s32.totalorder %s15, 1
    %p59 = por %p57, %p58
    %p61 = scmp.ne.s32.totalorder %s46, %s60
    %p62 = scmp.eq.s32.totalorder %s15, 0
    %p63 = por %p61, %p62
    %s65 = sadd.s32 %s64, 1
    %p68 = scmp.eq.s32.totalorder %s9, 1
    %p69 = scmp.ne.s32.totalorder %s64, %s66
    %p70 = scmp.eq.s32.totalorder %s9, 0
    %p71 = por %p69, %p70
    %p72 = scmp.ne.s32.totalorder %s64, %s66
    %p73 = scmp.eq.s32.totalorder %s14, 1
    %p74 = por %p72, %p73
    %p75 = scmp.ne.s32.totalorder %s66, %s67
    %p76 = scmp.eq.s32.totalorder %s14, 0
    %p77 = por %p75, %p76
    %p78 = scmp.ne.s32.totalorder %s66, %s67
    %p79 = scmp.eq.s32.totalorder %s15, 1
    %p80 = por %p78, %p79
    %p82 = scmp.ne.s32.totalorder %s67, %s81
    %p83 = scmp.eq.s32.totalorder %s15, 0
    %p84 = por %p82, %p83
    %s85 = ssub.s32 %s9, %s16
    %p86 = scmp.eq.s32.totalorder %s85, 0
    %s88 = sadd.s32 %s87, 1
    %s89 = scalar_select %p86, %s87, %s88
    %p92 = pneg %p86
    %p93 = scmp.eq.s32.totalorder %s9, 1
    %p94 = por %p92, %p93
    %p95 = scmp.ne.s32.totalorder %s87, %s90
    %p96 = scmp.eq.s32.totalorder %s9, 0
    %p97 = por %p95, %p96
    %p98 = scmp.ne.s32.totalorder %s87, %s90
    %p99 = scmp.eq.s32.totalorder %s14, 1
    %p100 = por %p98, %p99
    %p101 = scmp.ne.s32.totalorder %s90, %s91
    %p102 = scmp.eq.s32.totalorder %s14, 0
    %p103 = por %p101, %p102
    %p104 = scmp.ne.s32.totalorder %s90, %s91
    %p105 = scmp.eq.s32.totalorder %s15, 1
    %p106 = por %p104, %p105
    %p108 = scmp.ne.s32.totalorder %s91, %s107
    %p109 = scmp.eq.s32.totalorder %s15, 0
    %p110 = por %p108, %p109
    %p111 = scmp.le.s32.totalorder 1, %s9
    %p112 = scmp.lt.s32.totalorder %s9, 3
    %p113 = pnand %p111, %p112
    %p114 = pneg %p113
    // Predicated region
    $region9: #{conv_block_forward.1} parent=5 // pred_check
      _
    $region10: #{conv_block_forward.1} parent=5 // pred_check_branch
      %116 = sbr.rel (%p113) target = $region12
    $region11: #{conv_block_forward.1} parent=5 // pred_region
      %s117 = ssub.s32 %s9, 1
      // Predicated region
      $region13: #{conv_block_forward.1} parent=11 // pred_check
        %p118 = pneg %p56
      $region14: #{conv_block_forward.1} parent=11 // pred_check_branch
        %120 = sbr.rel (%p118) target = $region16
      $region15: #{conv_block_forward.1} parent=11 // pred_region
        _
      $region16: #{conv_block_forward.1} parent=11 // pred_fallthru
        _
      // Predicated region
      $region17: #{conv_block_forward.1} parent=11 // pred_check
        %p121 = pneg %p77
      $region18: #{conv_block_forward.1} parent=11 // pred_check_branch
        %123 = sbr.rel (%p121) target = $region20
      $region19: #{conv_block_forward.1} parent=11 // pred_region
        _
      $region20: #{conv_block_forward.1} parent=11 // pred_fallthru
        _
    $region12: #{conv_block_forward.1} parent=5 // pred_fallthru
      _
    %p124 = scmp.lt.s32.totalorder %s9, 2
    // Predicated region
    $region21: #{conv_block_forward.1} parent=5 // pred_check
      %p125 = pneg %p124
    $region22: #{conv_block_forward.1} parent=5 // pred_check_branch
      %127 = sbr.rel (%p125) target = $region24
    $region23: #{conv_block_forward.1} parent=5 // pred_region
      // Predicated region
      $region25: #{conv_block_forward.1} parent=23 // pred_check
        %p128 = pneg %p29
      $region26: #{conv_block_forward.1} parent=23 // pred_check_branch
        %130 = sbr.rel (%p128) target = $region28
      $region27: #{conv_block_forward.1} parent=23 // pred_region
        %p131 = scmp.lt.s32.totalorder %s9, 1
        %s132 = scalar_select %p131, %s9, 1
        %s133 = smul.addr %s132, 10
        %s134 = smul.addr %s133, 8
        %s135 = scalar_lea.vmem %s0, %s134
      $region28: #{conv_block_forward.1} parent=23 // pred_fallthru
        _
    $region24: #{conv_block_forward.1} parent=5 // pred_fallthru
      _
    %p136 = scmp.le.s32.totalorder 1, %s9
    %p137 = scmp.lt.s32.totalorder %s9, 3
    %p138 = pnand %p136, %p137
    %p139 = pneg %p138
    // Predicated region
    $region29: #{conv_block_forward.1} parent=5 // pred_check
      _
    $region30: #{conv_block_forward.1} parent=5 // pred_check_branch
      %141 = sbr.rel (%p138) target = $region32
    $region31: #{conv_block_forward.1} parent=5 // pred_region
      %s142 = ssub.s32 %s9, 1
      %p143 = scmp.lt.s32.totalorder %s14, 1
      %s144 = scalar_select %p143, %s14, 1
      %s145 = smul.addr %s144, 10
      %s146 = smul.addr %s145, 8
      %s147 = scalar_lea.vmem %s0, %s146
      %p148 = pneg %p35
      %p149 = pneg %p32
      %p150 = pneg %p56
      %p151 = pneg %p53
      %p152 = pneg %p77
      %p153 = pneg %p74
      %p154 = pneg %p103
      %p155 = pneg %p100
      %p156 = scmp.lt.s32.totalorder %s14, 1
      %s157 = scalar_select %p156, %s14, 1
      %s158 = smul.addr %s157, 2
      %s159 = smul.addr %s158, 8
      %s160 = scalar_lea.vmem %s3, %s159
      %p161 = scmp.lt.s32.totalorder %s14, 1
      %s162 = scalar_select %p161, %s14, 1
      %s163 = smul.addr %s162, 10
      %s164 = smul.addr %s163, 8
      %s165 = scalar_lea.vmem %s0, %s164
      %p166 = scmp.lt.s32.totalorder %s14, 1
      %s167 = scalar_select %p166, %s14, 1
      %s168 = smul.addr %s167, 2
      %s169 = smul.addr %s168, 8
      %s170 = scalar_lea.vmem %s3, %s169
      %v171 = vld [vmem:[%s1] sm:$0xff]
      %v172 = vld [vmem:[%s165] sm:$0xff]
      %v173 = vld [vmem:[%s165 + $0x8] sm:$0xff]
      %v174 = vld [vmem:[%s165 + $0x10] sm:$0xff]
      %v175 = vld [vmem:[%s165 + $0x18] sm:$0xff]
      %v176 = vld [vmem:[%s165 + $0x20] sm:$0xff]
      %v177 = vld [vmem:[%s165 + $0x28] sm:$0xff]
      %v178 = vld [vmem:[%s165 + $0x30] sm:$0xff]
      %v179 = vld [vmem:[%s165 + $0x38] sm:$0xff]
      %v180 = vld [vmem:[%s165 + $0x40] sm:$0xf]
      %v181 = vld [vmem:[%s165 + $0x48] sm:$0xf]
      %v182 = vld [vmem:[%s2] sm:$0xff]
      %184 = vset.pattern.permute.xlu0 0
      %185 = vperm.xlu0 %184, %v182
      %v186 = vpop.permute.xlu0 %185
      %vm188 = vcmask 293888
      %v190 = vsel %vm188, %v171, 0
      %vm192 = vcmask 1043456
      %v194 = vsel %vm192, %v180, 0
      %v197 = vsel %vm192, %v181, 0
      %199 = vmatprep.subr.mxu0 %v173
      %200 = vmatpush1.msra.mxu0 %v172
      %201 = vmatprep.subr.mxu0 %v175
      %202 = vmatpush1.msra.mxu0 %v174
      %203 = vmatprep.subr.mxu0 %v177
      %204 = vmatpush1.msra.mxu0 %v176
      %205 = vmatprep.subr.mxu0 %v179
      %206 = vmatpush1.msra.mxu0 %v178
      %207 = vmatprep.subr.mxu0 %v197
      %208 = vmatpush1.msra.mxu0 %v194
      %209 = vmatprep.subr.mxu0 0.0
      %210 = vmatpush1.msra.mxu0 0.0
      %211 = vmatprep.subr.mxu0 0.0
      %212 = vmatpush1.msra.mxu0 0.0
      %213 = vmatprep.subr.mxu0 0.0
      %214 = vmatpush1.msra.mxu0 0.0
      %215 = vmatprep.subr.mxu0 0.0
      %216 = vmatpush1.msra.mxu0 0.0
      %217 = vmatprep.subr.mxu0 0.0
      %218 = vmatpush1.msra.mxu0 0.0
      %219 = vmatprep.subr.mxu0 0.0
      %220 = vmatpush1.msra.mxu0 0.0
      %221 = vmatprep.subr.mxu0 0.0
      %222 = vmatpush1.msra.mxu0 0.0
      %223 = vmatprep.subr.mxu0 0.0
      %224 = vmatpush1.msra.mxu0 0.0
      %225 = vmatprep.subr.mxu0 0.0
      %226 = vmatpush1.msra.mxu0 0.0
      %227 = vmatprep.subr.mxu0 0.0
      %228 = vmatpush1.msra.mxu0 0.0
      %229 = vmatprep.subr.mxu0 0.0
      %230 = vmatpush1.msra.mxu0 0.0
      %231 = vmatprep.subr.mxu0 0.0
      %232 = vmatpush1.msra.mxu0 0.0
      %233 = vmatprep.subr.mxu0 0.0
      %234 = vmatpush1.msra.mxu0 0.0
      %235 = vmatprep.subr.mxu0 0.0
      %236 = vmatpush1.msra.mxu0 0.0
      %237 = vmatprep.subr.mxu0 0.0
      %238 = vmatpush1.msra.mxu0 0.0
      %239 = vmatprep.subr.mxu0 0.0
      %240 = vmatpush1.msra.mxu0 0.0
      %241 = vmatprep.subr.mxu0 0.0
      %242 = vmatpush1.msra.mxu0 0.0
      %243 = vmatprep.subr.mxu0 0.0
      %244 = vmatpush1.msra.mxu0 0.0
      %245 = vmatprep.subr.mxu0 0.0
      %246 = vmatpush1.msra.mxu0 0.0
      %247 = vmatprep.subr.mxu0 0.0
      %248 = vmatpush1.msra.mxu0 0.0
      %249 = vmatprep.subr.mxu0 0.0
      %250 = vmatpush1.msra.mxu0 0.0
      %251 = vmatprep.subr.mxu0 0.0
      %252 = vmatpush1.msra.mxu0 0.0
      %253 = vmatprep.subr.mxu0 0.0
      %254 = vmatpush1.msra.mxu0 0.0
      %255 = vmatprep.subr.mxu0 0.0
      %256 = vmatpush1.msra.mxu0 0.0
      %257 = vmatprep.subr.mxu0 0.0
      %258 = vmatpush1.msra.mxu0 0.0
      %259 = vmatprep.subr.mxu0 0.0
      %260 = vmatpush1.msra.mxu0 0.0
      %261 = vmatprep.subr.mxu0 0.0
      %262 = vmatpush1.msra.mxu0 0.0
      %263 = vmatprep.mubr.f32.mxu0 0.0
      %264 = vmatmul.mubr.f32.gmra.mrb[0].mxu0 %v190
      %v265 = vpop.f32.mrb[0].mxu0
      %v266 = vadd.f32 %v186, %v265
      %v267 = vpop.f32.mrb[0].mxu0
      %v268 = vadd.f32 %v186, %v267
      %269 = vdwg.mxu0
      %vm270 = vcmp.gt.f32.partialorder %v266, 0.0
      %vm271 = vcmp.gt.f32.partialorder %v268, 0.0
      %272 = vset.pattern.permute.xlu0 1
      %273 = vperm.xlu0 %272, %v182
      %v274 = vpop.permute.xlu0 %273
      %v276 = vmul.f32 %v274, %v266
      %v277 = vmul.f32 %v274, %v268
      %v278 = vsel %vm270, %v266, %v276
      %v279 = vsel %vm271, %v268, %v277
      %280 = vst [vmem:[%s170] sm:$0xff] %v278
      %281 = vst [vmem:[%s170 + $0x8] sm:$0xff] %v279
      %p282 = scmp.lt.s32.totalorder %s14, 1
      %s283 = scalar_select %p282, %s14, 1
      %s284 = smul.addr %s283, 2
      %s285 = smul.addr %s284, 8
      %s286 = scalar_lea.vmem %s3, %s285
      // Predicated region
      $region33: #{conv_block_forward.1} parent=31 // pred_check
        %p287 = pneg %p100
      $region34: #{conv_block_forward.1} parent=31 // pred_check_branch
        %289 = sbr.rel (%p287) target = $region36
      $region35: #{conv_block_forward.1} parent=31 // pred_region
        _
      $region36: #{conv_block_forward.1} parent=31 // pred_fallthru
        _
    $region32: #{conv_block_forward.1} parent=5 // pred_fallthru
      _
    %p290 = scmp.le.s32.totalorder 2, %s9
    // Predicated region
    $region37: #{conv_block_forward.1} parent=5 // pred_check
      %p291 = pneg %p290
    $region38: #{conv_block_forward.1} parent=5 // pred_check_branch
      %293 = sbr.rel (%p291) target = $region40
    $region39: #{conv_block_forward.1} parent=5 // pred_region
      %s294 = ssub.s32 %s9, 2
      // Predicated region
      $region41: #{conv_block_forward.1} parent=39 // pred_check
        %p295 = pneg %p106
      $region42: #{conv_block_forward.1} parent=39 // pred_check_branch
        %297 = sbr.rel (%p295) target = $region44
      $region43: #{conv_block_forward.1} parent=39 // pred_region
        %p298 = scmp.lt.s32.totalorder %s15, 1
        %s299 = scalar_select %p298, %s15, 1
        %s300 = smul.addr %s299, 2
        %s301 = smul.addr %s300, 8
        %s302 = scalar_lea.vmem %s3, %s301
      $region44: #{conv_block_forward.1} parent=39 // pred_fallthru
        _
    $region40: #{conv_block_forward.1} parent=5 // pred_fallthru
      _
  $region6: #{conv_block_forward.1} parent=0 // loop_footer
    %s13 = sadd.s32 1, %s9
  $region7: #{conv_block_forward.1} parent=0 // loop_footer_branch
    %8 = sbr.rel target = $region3
  $region8: #{conv_block_forward.1} parent=0 // loop_exit
    _

</llo_original>
